<compile_context>
chip_gen: v7x
topology: tpu7x:2x2x1
jax: 0.10.0
libtpu: 0.0.40
codegen_flags: <defaults>
</compile_context>

<pallas_src>
import functools
import math

import jax
import jax.numpy as jnp
from jax import lax
from jax.experimental import pallas as pl
from jax.experimental.pallas import tpu as pltpu

_E = math.e          # e = 1 / exp(-1); the reference scales residual/Jacobian by it
_DET_TINY = 1e-35    # |det| below this (or non-finite) => graceful freeze
_DET_BIG = 3.0e38


def _maxent_newton_kernel(scalars_ref, x_ref, mask_ref, lam_ref, *, max_iter, tol):
    """Vectorized Newton solve for one chunk of NB problems.

    scalars_ref : VMEM f32[NB, 8]   cols = [mu, var, lam1_0, lam2_0, valid, 0, 0, 0]
    x_ref       : VMEM f32[NB, Np]  support points (lane padding = edge value)
    mask_ref    : VMEM f32[1,  Np]  1.0 for real support points, 0.0 for padding
    lam_ref     : VMEM f32[NB, 2]   output [lam1, lam2] per problem
    """
    sc = scalars_ref[...]                        # (NB, 8)
    mu    = sc[:, 0:1]                           # (NB, 1)
    var   = sc[:, 1:2]
    l1_0  = sc[:, 2:3]
    l2_0  = sc[:, 3:4]
    valid = sc[:, 4:5] > 0.5                     # (NB, 1) bool

    x     = x_ref[...]                           # (NB, Np)
    maskv = mask_ref[...]                        # (1,  Np), broadcasts over NB

    # ---- loop-invariant tiles / per-problem bounds --------------------------
    C2 = (x - mu) * (x - mu)                     # only x and C2 stay live in the loop
    x_min  = jnp.min(x,  axis=-1, keepdims=True)
    x_max  = jnp.max(x,  axis=-1, keepdims=True)
    c2_min = jnp.min(C2, axis=-1, keepdims=True)
    c2_max = jnp.max(C2, axis=-1, keepdims=True)
    mu_e   = mu * _E
    var_e  = var * _E

    def _rsum(t):                                # (NB, Np) -> (NB, 1)
        return jnp.sum(t, axis=-1, keepdims=True)

    def full_eval(l1, l2):
        """compute_fx = -[fx_1; fx_2] and the symmetric Jacobian, per problem.

        With E = exp(-l1*x - l2*C^2), sE = sum(E), e = exp(1) the reference is:
          compute_fx[0] = e*sum(x  E)/sE - e*mu      (= -fx_1)
          compute_fx[1] = e*sum(C2 E)/sE - e*var     (= -fx_2)
          J[0,0] = e*sum(x^2  E)/sE + e
          J[0,1] = e*sum(x C2 E)/sE + e   (== J[1,0])
          J[1,1] = e*sum(C^4  E)/sE + e
        The exponent is shifted by a per-problem scalar upper bound computed
        from loop-invariant extrema (no per-iteration XLU max); the shift
        cancels in every ratio above.
        """
        shift = (jnp.maximum(-l1 * x_min, -l1 * x_max) +
                 jnp.maximum(-l2 * c2_min, -l2 * c2_max))      # (NB, 1), a <= shift
        a = (-l1) * x + (-l2) * C2 - shift                     # (NB, Np), <= 0
        E = jnp.exp(a) * maskv                                 # padded lanes -> 0
        xE  = x  * E
        C2E = C2 * E
        sE    = _rsum(E)
        sxE   = _rsum(xE)
        sC2E  = _rsum(C2E)
        sx2E  = _rsum(x * xE)
        sxC2E = _rsum(C2 * xE)
        sC4E  = _rsum(C2 * C2E)
        inv_den = _E / sE                                      # e / sum(E)
        b1  = sxE  * inv_den - mu_e
        b2  = sC2E * inv_den - var_e
        j00 = (sx2E  + sE) * inv_den
        j01 = (sxC2E + sE) * inv_den
        j11 = (sC4E  + sE) * inv_den
        return b1, b2, j00, j01, j11

    # The reference's first while-check and its first Newton body both
    # evaluate at lam0 -> evaluate once and share it.
    b1_0, b2_0, j00_0, j01_0, j11_0 = full_eval(l1_0, l2_0)

    # carry = (lam1, lam2,                 current lambda               (NB,1) each
    #          cb1, cb2,                   residual at the *stale* point that the
    #                                      reference while-condition checks
    #          eb1, eb2, j00, j01, j11,    full eval at the current lambda
    #          it)                         Newton bodies executed (scalar int32)
    init = (l1_0, l2_0, b1_0, b2_0, b1_0, b2_0, j00_0, j01_0, j11_0, jnp.int32(0))

    def _active(cb1, cb2, it):
        # reference: `while abs(compute_fx(stale_lam).mean()) > tol`, with the
        # post-body `if i > max_iter: break` folded in.  abs(NaN) > tol is
        # False in numpy, so a NaN residual freezes the problem here too.
        return valid & (jnp.abs((cb1 + cb2) * 0.5) > tol) & (it <= max_iter)

    def newton_step(carry):
        l1, l2, cb1, cb2, eb1, eb2, j00, j01, j11, it = carry
        act = _active(cb1, cb2, it)

        det = j00 * j11 - j01 * j01
        abs_det = jnp.abs(det)
        det_ok = (abs_det >= _DET_TINY) & (abs_det <= _DET_BIG)   # False for NaN/Inf
        inv_det = 1.0 / jnp.where(det_ok, det, 1.0)
        d1 = (j11 * eb1 - j01 * eb2) * inv_det
        d2 = (j00 * eb2 - j01 * eb1) * inv_det

        go     = act & det_ok                   # take a Newton step
        finish = act & jnp.logical_not(det_ok)  # graceful freeze (reference's
                                                # np.linalg.solve would raise)
        n_l1 = jnp.where(go, l1 + d1, l1)
        n_l2 = jnp.where(go, l2 + d2, l2)

        nb1, nb2, nj00, nj01, nj11 = full_eval(n_l1, n_l2)

        zero = jnp.zeros_like(cb1)
        n_cb1 = jnp.where(go, eb1, jnp.where(finish, zero, cb1))
        n_cb2 = jnp.where(go, eb2, jnp.where(finish, zero, cb2))
        n_eb1 = jnp.where(go, nb1, eb1)
        n_eb2 = jnp.where(go, nb2, eb2)
        n_j00 = jnp.where(go, nj00, j00)
        n_j01 = jnp.where(go, nj01, j01)
        n_j11 = jnp.where(go, nj11, j11)
        return (n_l1, n_l2, n_cb1, n_cb2, n_eb1, n_eb2,
                n_j00, n_j01, n_j11, it + jnp.int32(1))

    def cond_fn(carry):
        _l1, _l2, cb1, cb2, _e1, _e2, _ja, _jb, _jc, it = carry
        any_active = jnp.max(jnp.where(_active(cb1, cb2, it),
                                       jnp.float32(1.0), jnp.float32(0.0)))
        return any_active > 0.0

    def body_fn(carry):
        # Two Newton steps per while body: halves the vector->scalar
        # convergence-check overhead.  Per-problem masking inside each step
        # keeps every problem's iteration count identical to the reference.
        return newton_step(newton_step(carry))

    out = lax.while_loop(cond_fn, body_fn, init)
    lam_ref[:, 0:1] = out[0]
    lam_ref[:, 1:2] = out[1]


def _round_up(v, m):
    return (v + m - 1) // m * m


def maxent_newton(x, mu, var, lam1=0.0, lam2=0.0, max_iter=1000, tol=1e-6,
                  block_batch=None):
    """JAX/Pallas equivalent of MultipleMaxEnt_Model.forward.

    If `mu` is a scalar, all of `x` is one support set (any shape); returns
    lam of shape (2, 1).  If `mu` has shape (B,), `x` is treated as (B, N)
    (one support row per problem); returns lam of shape (B, 2, 1).
    """
    x = jnp.asarray(x, jnp.float32)
    mu_a = jnp.asarray(mu, jnp.float32)
    single = (mu_a.ndim == 0)
    if single:
        xb = x.reshape(1, -1)
        B = 1
    else:
        B = int(mu_a.shape[0])
        xb = x.reshape(B, -1)
    N = xb.shape[1]

    def as_col(v):
        return jnp.broadcast_to(jnp.asarray(v, jnp.float32).reshape(-1), (B,))

    mu_v, var_v = as_col(mu), as_col(var)
    l1_v, l2_v = as_col(lam1), as_col(lam2)

    # ---- lane padding: support length -> multiple of 128, edge-replicated ---
    Np = max(128, _round_up(N, 128))
    if Np != N:
        xb = jnp.concatenate(
            [xb, jnp.broadcast_to(xb[:, -1:], (B, Np - N))], axis=1)
    mask = (jnp.arange(Np, dtype=jnp.int32) < N).astype(jnp.float32)[None, :]

    # ---- batch padding / chunking --------------------------------------------
    # One grid step solves NB problems at once (vectorized over sublanes).
    # NB is capped so the per-step working set stays well inside VMEM on every
    # generation (v7x has only 64 MiB), and the grid axis is "parallel" so
    # chunks shard across v7x's two TensorCores.
    if block_batch is None:
        nb_cap = (8 * 1024 * 1024) // (Np * 4 * 10)     # ~8 MiB of live tiles
        nb_cap = max(8, min(256, (nb_cap // 8) * 8))
    else:
        nb_cap = max(8, _round_up(int(block_batch), 8))
    NB = min(_round_up(B, 8), nb_cap)
    B_pad = _round_up(B, NB)

    def pad_b(a):
        if B_pad == B:
            return a
        pad = jnp.broadcast_to(a[-1:], (B_pad - B,) + a.shape[1:])
        return jnp.concatenate([a, pad], axis=0)

    xb = pad_b(xb)
    valid_v = jnp.concatenate(
        [jnp.ones((B,), jnp.float32), jnp.zeros((B_pad - B,), jnp.float32)])
    zcol = jnp.zeros((B_pad,), jnp.float32)
    scal = jnp.stack([pad_b(mu_v), pad_b(var_v), pad_b(l1_v), pad_b(l2_v),
                      valid_v, zcol, zcol, zcol], axis=1)        # (B_pad, 8)

    kernel = functools.partial(_maxent_newton_kernel,
                               max_iter=int(max_iter), tol=float(tol))

    lam = pl.pallas_call(
        kernel,
        grid=(B_pad // NB,),
        out_shape=jax.ShapeDtypeStruct((B_pad, 2), jnp.float32),
        in_specs=[
            pl.BlockSpec((NB, 8), lambda i: (i, 0)),     # per-problem scalars
            pl.BlockSpec((NB, Np), lambda i: (i, 0)),    # support chunk
            pl.BlockSpec((1, Np), lambda i: (0, 0)),     # lane-validity mask
        ],
        out_specs=pl.BlockSpec((NB, 2), lambda i: (i, 0)),
        compiler_params=pltpu.CompilerParams(
            dimension_semantics=("parallel",),
        ),
    )(scal, xb, mask)

    lam = lam[:B]
    if single:
        return lam[0].reshape(2, 1)
    return lam.reshape(B, 2, 1)


if __name__ == "__main__":
    key = jax.random.PRNGKey(0)
    # Batch of 2 independent problems; N deliberately not a multiple of 128 to
    # exercise the lane-padding/mask path.
    B, N = 2, 1000
    x = jax.random.uniform(key, (B, N), dtype=jnp.float32)
    mu = jnp.array([0.30, 0.55], dtype=jnp.float32)     # target means
    var = jnp.array([0.04, 0.02], dtype=jnp.float32)    # target variances

    lam_batched = maxent_newton(x, mu, var, lam1=0.0, lam2=0.0,
                                max_iter=200, tol=1e-6)
    jax.block_until_ready(lam_batched)

    # Single-problem path (mirrors the reference forward() on one x/mu/var).
    lam_single = maxent_newton(x[0], 0.30, 0.04, max_iter=200, tol=1e-6)
    jax.block_until_ready(lam_single)

    # TODO(synk): the reference's float64 / tol=1e-15 precision and the
    # LinAlgError raised by np.linalg.solve on a singular Jacobian have no
    # in-kernel equivalent (f32 math; singular problems are frozen in place).
    print("KERNEL_OK")
</pallas_src>

<mosaic_0001>
module attributes {stable_mosaic.version = 11 : i64} {
  func.func @_maxent_newton_kernel(%arg0: i32, %arg1: memref<8x8xf32, #tpu.memory_space<vmem>>, %arg2: memref<8x1024xf32, #tpu.memory_space<vmem>>, %arg3: memref<1x1024xf32, #tpu.memory_space<vmem>>, %arg4: memref<8x2xf32, #tpu.memory_space<vmem>>) attributes {dimension_semantics = [#tpu.dimension_semantics<parallel>], iteration_bounds = array<i64: 1>, scalar_prefetch = 0 : i64, scratch_operands = 0 : i64, tpu.core_type = #tpu.core_type<tc>, window_params = [{transform_indices = @transform_0, window_bounds = array<i64: 8, 8>}, {transform_indices = @transform_1, window_bounds = array<i64: 8, 1024>}, {pipeline_mode = #tpu.pipeline_mode<synchronous>, transform_indices = @transform_2, window_bounds = array<i64: 1, 1024>}, {transform_indices = @transform_3, window_bounds = array<i64: 8, 2>}]} {
    %c0 = arith.constant 0 : index
    %c0_0 = arith.constant 0 : index
    %0 = vector.load %arg1[%c0, %c0_0] : memref<8x8xf32, #tpu.memory_space<vmem>>, vector<8x8xf32>
    %1 = vector.extract_strided_slice %0 {offsets = [0, 0], sizes = [8, 1], strides = [1, 1]} : vector<8x8xf32> to vector<8x1xf32>
    %2 = vector.extract_strided_slice %0 {offsets = [0, 1], sizes = [8, 1], strides = [1, 1]} : vector<8x8xf32> to vector<8x1xf32>
    %3 = vector.extract_strided_slice %0 {offsets = [0, 2], sizes = [8, 1], strides = [1, 1]} : vector<8x8xf32> to vector<8x1xf32>
    %4 = vector.extract_strided_slice %0 {offsets = [0, 3], sizes = [8, 1], strides = [1, 1]} : vector<8x8xf32> to vector<8x1xf32>
    %5 = vector.extract_strided_slice %0 {offsets = [0, 4], sizes = [8, 1], strides = [1, 1]} : vector<8x8xf32> to vector<8x1xf32>
    %cst = arith.constant 5.000000e-01 : f32
    %6 = vector.broadcast %cst : f32 to vector<8x1xf32>
    %7 = arith.cmpf ogt, %5, %6 : vector<8x1xf32>
    %c0_1 = arith.constant 0 : index
    %c0_2 = arith.constant 0 : index
    %8 = vector.load %arg2[%c0_1, %c0_2] : memref<8x1024xf32, #tpu.memory_space<vmem>>, vector<8x1024xf32>
    %c0_3 = arith.constant 0 : index
    %c0_4 = arith.constant 0 : index
    %9 = vector.load %arg3[%c0_3, %c0_4] : memref<1x1024xf32, #tpu.memory_space<vmem>>, vector<1x1024xf32>
    %10 = vector.broadcast %1 : vector<8x1xf32> to vector<8x1024xf32>
    %11 = arith.subf %8, %10 : vector<8x1024xf32>
    %12 = vector.broadcast %1 : vector<8x1xf32> to vector<8x1024xf32>
    %13 = arith.subf %8, %12 : vector<8x1024xf32>
    %14 = arith.mulf %11, %13 : vector<8x1024xf32>
    %cst_5 = arith.constant dense<0x7F800000> : vector<8xf32>
    %15 = vector.multi_reduction <minimumf>, %8, %cst_5 [1] : vector<8x1024xf32> to vector<8xf32>
    %16 = vector.shape_cast %15 : vector<8xf32> to vector<8x1xf32>
    %cst_6 = arith.constant dense<0xFF800000> : vector<8xf32>
    %17 = vector.multi_reduction <maximumf>, %8, %cst_6 [1] : vector<8x1024xf32> to vector<8xf32>
    %18 = vector.shape_cast %17 : vector<8xf32> to vector<8x1xf32>
    %cst_7 = arith.constant dense<0x7F800000> : vector<8xf32>
    %19 = vector.multi_reduction <minimumf>, %14, %cst_7 [1] : vector<8x1024xf32> to vector<8xf32>
    %20 = vector.shape_cast %19 : vector<8xf32> to vector<8x1xf32>
    %cst_8 = arith.constant dense<0xFF800000> : vector<8xf32>
    %21 = vector.multi_reduction <maximumf>, %14, %cst_8 [1] : vector<8x1024xf32> to vector<8xf32>
    %22 = vector.shape_cast %21 : vector<8xf32> to vector<8x1xf32>
    %cst_9 = arith.constant 2.71828175 : f32
    %23 = vector.broadcast %cst_9 : f32 to vector<8x1xf32>
    %24 = arith.mulf %1, %23 : vector<8x1xf32>
    %cst_10 = arith.constant 2.71828175 : f32
    %25 = vector.broadcast %cst_10 : f32 to vector<8x1xf32>
    %26 = arith.mulf %2, %25 : vector<8x1xf32>
    %cst_11 = arith.constant 0.000000e+00 : f32
    %27 = vector.broadcast %cst_11 : f32 to vector<8x1xf32>
    %28 = arith.subf %27, %3 : vector<8x1xf32>
    %29 = arith.mulf %28, %16 : vector<8x1xf32>
    %cst_12 = arith.constant 0.000000e+00 : f32
    %30 = vector.broadcast %cst_12 : f32 to vector<8x1xf32>
    %31 = arith.subf %30, %3 : vector<8x1xf32>
    %32 = arith.mulf %31, %18 : vector<8x1xf32>
    %33 = arith.maximumf %29, %32 : vector<8x1xf32>
    %cst_13 = arith.constant 0.000000e+00 : f32
    %34 = vector.broadcast %cst_13 : f32 to vector<8x1xf32>
    %35 = arith.subf %34, %4 : vector<8x1xf32>
    %36 = arith.mulf %35, %20 : vector<8x1xf32>
    %cst_14 = arith.constant 0.000000e+00 : f32
    %37 = vector.broadcast %cst_14 : f32 to vector<8x1xf32>
    %38 = arith.subf %37, %4 : vector<8x1xf32>
    %39 = arith.mulf %38, %22 : vector<8x1xf32>
    %40 = arith.maximumf %36, %39 : vector<8x1xf32>
    %41 = arith.addf %33, %40 : vector<8x1xf32>
    %cst_15 = arith.constant 0.000000e+00 : f32
    %42 = vector.broadcast %cst_15 : f32 to vector<8x1xf32>
    %43 = arith.subf %42, %3 : vector<8x1xf32>
    %44 = vector.broadcast %43 : vector<8x1xf32> to vector<8x1024xf32>
    %45 = arith.mulf %44, %8 : vector<8x1024xf32>
    %cst_16 = arith.constant 0.000000e+00 : f32
    %46 = vector.broadcast %cst_16 : f32 to vector<8x1xf32>
    %47 = arith.subf %46, %4 : vector<8x1xf32>
    %48 = vector.broadcast %47 : vector<8x1xf32> to vector<8x1024xf32>
    %49 = arith.mulf %48, %14 : vector<8x1024xf32>
    %50 = arith.addf %45, %49 : vector<8x1024xf32>
    %51 = vector.broadcast %41 : vector<8x1xf32> to vector<8x1024xf32>
    %52 = arith.subf %50, %51 : vector<8x1024xf32>
    %53 = math.exp %52 : vector<8x1024xf32>
    %54 = vector.broadcast %9 : vector<1x1024xf32> to vector<8x1024xf32>
    %55 = arith.mulf %53, %54 : vector<8x1024xf32>
    %56 = arith.mulf %8, %55 : vector<8x1024xf32>
    %57 = arith.mulf %14, %55 : vector<8x1024xf32>
    %cst_17 = arith.constant dense<0.000000e+00> : vector<8xf32>
    %58 = vector.multi_reduction <add>, %55, %cst_17 [1] : vector<8x1024xf32> to vector<8xf32>
    %59 = vector.shape_cast %58 : vector<8xf32> to vector<8x1xf32>
    %cst_18 = arith.constant dense<0.000000e+00> : vector<8xf32>
    %60 = vector.multi_reduction <add>, %56, %cst_18 [1] : vector<8x1024xf32> to vector<8xf32>
    %61 = vector.shape_cast %60 : vector<8xf32> to vector<8x1xf32>
    %cst_19 = arith.constant dense<0.000000e+00> : vector<8xf32>
    %62 = vector.multi_reduction <add>, %57, %cst_19 [1] : vector<8x1024xf32> to vector<8xf32>
    %63 = vector.shape_cast %62 : vector<8xf32> to vector<8x1xf32>
    %64 = arith.mulf %8, %56 : vector<8x1024xf32>
    %cst_20 = arith.constant dense<0.000000e+00> : vector<8xf32>
    %65 = vector.multi_reduction <add>, %64, %cst_20 [1] : vector<8x1024xf32> to vector<8xf32>
    %66 = vector.shape_cast %65 : vector<8xf32> to vector<8x1xf32>
    %67 = arith.mulf %14, %56 : vector<8x1024xf32>
    %cst_21 = arith.constant dense<0.000000e+00> : vector<8xf32>
    %68 = vector.multi_reduction <add>, %67, %cst_21 [1] : vector<8x1024xf32> to vector<8xf32>
    %69 = vector.shape_cast %68 : vector<8xf32> to vector<8x1xf32>
    %70 = arith.mulf %14, %57 : vector<8x1024xf32>
    %cst_22 = arith.constant dense<0.000000e+00> : vector<8xf32>
    %71 = vector.multi_reduction <add>, %70, %cst_22 [1] : vector<8x1024xf32> to vector<8xf32>
    %72 = vector.shape_cast %71 : vector<8xf32> to vector<8x1xf32>
    %cst_23 = arith.constant 2.71828175 : f32
    %73 = vector.broadcast %cst_23 : f32 to vector<8x1xf32>
    %74 = arith.divf %73, %59 : vector<8x1xf32>
    %75 = arith.mulf %61, %74 : vector<8x1xf32>
    %76 = arith.subf %75, %24 : vector<8x1xf32>
    %77 = arith.mulf %63, %74 : vector<8x1xf32>
    %78 = arith.subf %77, %26 : vector<8x1xf32>
    %79 = arith.addf %66, %59 : vector<8x1xf32>
    %80 = arith.mulf %79, %74 : vector<8x1xf32>
    %81 = arith.addf %69, %59 : vector<8x1xf32>
    %82 = arith.mulf %81, %74 : vector<8x1xf32>
    %83 = arith.addf %72, %59 : vector<8x1xf32>
    %84 = arith.mulf %83, %74 : vector<8x1xf32>
    %c0_i32 = arith.constant 0 : i32
    %85:10 = scf.while (%arg5 = %3, %arg6 = %4, %arg7 = %76, %arg8 = %78, %arg9 = %76, %arg10 = %78, %arg11 = %80, %arg12 = %82, %arg13 = %84, %arg14 = %c0_i32) : (vector<8x1xf32>, vector<8x1xf32>, vector<8x1xf32>, vector<8x1xf32>, vector<8x1xf32>, vector<8x1xf32>, vector<8x1xf32>, vector<8x1xf32>, vector<8x1xf32>, i32) -> (vector<8x1xf32>, vector<8x1xf32>, vector<8x1xf32>, vector<8x1xf32>, vector<8x1xf32>, vector<8x1xf32>, vector<8x1xf32>, vector<8x1xf32>, vector<8x1xf32>, i32) {
      %88 = arith.addf %arg7, %arg8 : vector<8x1xf32>
      %cst_27 = arith.constant 5.000000e-01 : f32
      %89 = vector.broadcast %cst_27 : f32 to vector<8x1xf32>
      %90 = arith.mulf %88, %89 : vector<8x1xf32>
      %91 = math.absf %90 : vector<8x1xf32>
      %cst_28 = arith.constant 9.99999997E-7 : f32
      %92 = vector.broadcast %cst_28 : f32 to vector<8x1xf32>
      %93 = arith.cmpf ogt, %91, %92 : vector<8x1xf32>
      %94 = arith.andi %7, %93 : vector<8x1xi1>
      %c200_i32 = arith.constant 200 : i32
      %95 = arith.cmpi sle, %arg14, %c200_i32 : i32
      %96 = vector.broadcast %95 : i1 to vector<8x1xi1>
      %97 = arith.andi %94, %96 : vector<8x1xi1>
      %cst_29 = arith.constant 1.000000e+00 : f32
      %cst_30 = arith.constant 0.000000e+00 : f32
      %98 = vector.broadcast %cst_29 : f32 to vector<8x1xf32>
      %99 = vector.broadcast %cst_30 : f32 to vector<8x1xf32>
      %100 = arith.select %97, %98, %99 : vector<8x1xi1>, vector<8x1xf32>
      %101 = vector.shape_cast %100 : vector<8x1xf32> to vector<1x8x1xf32>
      %cst_31 = arith.constant dense<0xFF800000> : vector<1xf32>
      %102 = vector.multi_reduction <maximumf>, %101, %cst_31 [1, 2] : vector<1x8x1xf32> to vector<1xf32>
      %103 = vector.shape_cast %102 : vector<1xf32> to vector<1x1x1xf32>
      %104 = vector.extract %103[0, 0, 0] : f32 from vector<1x1x1xf32>
      %cst_32 = arith.constant 0.000000e+00 : f32
      %105 = arith.cmpf ogt, %104, %cst_32 : f32
      scf.condition(%105) %arg5, %arg6, %arg7, %arg8, %arg9, %arg10, %arg11, %arg12, %arg13, %arg14 : vector<8x1xf32>, vector<8x1xf32>, vector<8x1xf32>, vector<8x1xf32>, vector<8x1xf32>, vector<8x1xf32>, vector<8x1xf32>, vector<8x1xf32>, vector<8x1xf32>, i32
    } do {
    ^bb0(%arg5: vector<8x1xf32>, %arg6: vector<8x1xf32>, %arg7: vector<8x1xf32>, %arg8: vector<8x1xf32>, %arg9: vector<8x1xf32>, %arg10: vector<8x1xf32>, %arg11: vector<8x1xf32>, %arg12: vector<8x1xf32>, %arg13: vector<8x1xf32>, %arg14: i32):
      %88 = arith.addf %arg7, %arg8 : vector<8x1xf32>
      %cst_27 = arith.constant 5.000000e-01 : f32
      %89 = vector.broadcast %cst_27 : f32 to vector<8x1xf32>
      %90 = arith.mulf %88, %89 : vector<8x1xf32>
      %91 = math.absf %90 : vector<8x1xf32>
      %cst_28 = arith.constant 9.99999997E-7 : f32
      %92 = vector.broadcast %cst_28 : f32 to vector<8x1xf32>
      %93 = arith.cmpf ogt, %91, %92 : vector<8x1xf32>
      %94 = arith.andi %7, %93 : vector<8x1xi1>
      %c200_i32 = arith.constant 200 : i32
      %95 = arith.cmpi sle, %arg14, %c200_i32 : i32
      %96 = vector.broadcast %95 : i1 to vector<8x1xi1>
      %97 = arith.andi %94, %96 : vector<8x1xi1>
      %98 = arith.mulf %arg11, %arg13 : vector<8x1xf32>
      %99 = arith.mulf %arg12, %arg12 : vector<8x1xf32>
      %100 = arith.subf %98, %99 : vector<8x1xf32>
      %101 = math.absf %100 : vector<8x1xf32>
      %cst_29 = arith.constant 1.000000e-35 : f32
      %102 = vector.broadcast %cst_29 : f32 to vector<8x1xf32>
      %103 = arith.cmpf oge, %101, %102 : vector<8x1xf32>
      %cst_30 = arith.constant 3.000000e+38 : f32
      %104 = vector.broadcast %cst_30 : f32 to vector<8x1xf32>
      %105 = arith.cmpf ole, %101, %104 : vector<8x1xf32>
      %106 = arith.andi %103, %105 : vector<8x1xi1>
      %cst_31 = arith.constant 1.000000e+00 : f32
      %107 = vector.broadcast %cst_31 : f32 to vector<8x1xf32>
      %108 = arith.select %106, %100, %107 : vector<8x1xi1>, vector<8x1xf32>
      %cst_32 = arith.constant 1.000000e+00 : f32
      %109 = vector.broadcast %cst_32 : f32 to vector<8x1xf32>
      %110 = arith.divf %109, %108 : vector<8x1xf32>
      %111 = arith.mulf %arg13, %arg9 : vector<8x1xf32>
      %112 = arith.mulf %arg12, %arg10 : vector<8x1xf32>
      %113 = arith.subf %111, %112 : vector<8x1xf32>
      %114 = arith.mulf %113, %110 : vector<8x1xf32>
      %115 = arith.mulf %arg11, %arg10 : vector<8x1xf32>
      %116 = arith.mulf %arg12, %arg9 : vector<8x1xf32>
      %117 = arith.subf %115, %116 : vector<8x1xf32>
      %118 = arith.mulf %117, %110 : vector<8x1xf32>
      %119 = arith.andi %97, %106 : vector<8x1xi1>
      %cst_33 = arith.constant dense<true> : vector<8x1xi1>
      %120 = arith.xori %106, %cst_33 : vector<8x1xi1>
      %121 = arith.andi %97, %120 : vector<8x1xi1>
      %122 = arith.addf %arg5, %114 : vector<8x1xf32>
      %123 = arith.select %119, %122, %arg5 : vector<8x1xi1>, vector<8x1xf32>
      %124 = arith.addf %arg6, %118 : vector<8x1xf32>
      %125 = arith.select %119, %124, %arg6 : vector<8x1xi1>, vector<8x1xf32>
      %cst_34 = arith.constant 0.000000e+00 : f32
      %126 = vector.broadcast %cst_34 : f32 to vector<8x1xf32>
      %127 = arith.subf %126, %123 : vector<8x1xf32>
      %128 = arith.mulf %127, %16 : vector<8x1xf32>
      %cst_35 = arith.constant 0.000000e+00 : f32
      %129 = vector.broadcast %cst_35 : f32 to vector<8x1xf32>
      %130 = arith.subf %129, %123 : vector<8x1xf32>
      %131 = arith.mulf %130, %18 : vector<8x1xf32>
      %132 = arith.maximumf %128, %131 : vector<8x1xf32>
      %cst_36 = arith.constant 0.000000e+00 : f32
      %133 = vector.broadcast %cst_36 : f32 to vector<8x1xf32>
      %134 = arith.subf %133, %125 : vector<8x1xf32>
      %135 = arith.mulf %134, %20 : vector<8x1xf32>
      %cst_37 = arith.constant 0.000000e+00 : f32
      %136 = vector.broadcast %cst_37 : f32 to vector<8x1xf32>
      %137 = arith.subf %136, %125 : vector<8x1xf32>
      %138 = arith.mulf %137, %22 : vector<8x1xf32>
      %139 = arith.maximumf %135, %138 : vector<8x1xf32>
      %140 = arith.addf %132, %139 : vector<8x1xf32>
      %cst_38 = arith.constant 0.000000e+00 : f32
      %141 = vector.broadcast %cst_38 : f32 to vector<8x1xf32>
      %142 = arith.subf %141, %123 : vector<8x1xf32>
      %143 = vector.broadcast %142 : vector<8x1xf32> to vector<8x1024xf32>
      %144 = arith.mulf %143, %8 : vector<8x1024xf32>
      %cst_39 = arith.constant 0.000000e+00 : f32
      %145 = vector.broadcast %cst_39 : f32 to vector<8x1xf32>
      %146 = arith.subf %145, %125 : vector<8x1xf32>
      %147 = vector.broadcast %146 : vector<8x1xf32> to vector<8x1024xf32>
      %148 = arith.mulf %147, %14 : vector<8x1024xf32>
      %149 = arith.addf %144, %148 : vector<8x1024xf32>
      %150 = vector.broadcast %140 : vector<8x1xf32> to vector<8x1024xf32>
      %151 = arith.subf %149, %150 : vector<8x1024xf32>
      %152 = math.exp %151 : vector<8x1024xf32>
      %153 = vector.broadcast %9 : vector<1x1024xf32> to vector<8x1024xf32>
      %154 = arith.mulf %152, %153 : vector<8x1024xf32>
      %155 = arith.mulf %8, %154 : vector<8x1024xf32>
      %156 = arith.mulf %14, %154 : vector<8x1024xf32>
      %cst_40 = arith.constant dense<0.000000e+00> : vector<8xf32>
      %157 = vector.multi_reduction <add>, %154, %cst_40 [1] : vector<8x1024xf32> to vector<8xf32>
      %158 = vector.shape_cast %157 : vector<8xf32> to vector<8x1xf32>
      %cst_41 = arith.constant dense<0.000000e+00> : vector<8xf32>
      %159 = vector.multi_reduction <add>, %155, %cst_41 [1] : vector<8x1024xf32> to vector<8xf32>
      %160 = vector.shape_cast %159 : vector<8xf32> to vector<8x1xf32>
      %cst_42 = arith.constant dense<0.000000e+00> : vector<8xf32>
      %161 = vector.multi_reduction <add>, %156, %cst_42 [1] : vector<8x1024xf32> to vector<8xf32>
      %162 = vector.shape_cast %161 : vector<8xf32> to vector<8x1xf32>
      %163 = arith.mulf %8, %155 : vector<8x1024xf32>
      %cst_43 = arith.constant dense<0.000000e+00> : vector<8xf32>
      %164 = vector.multi_reduction <add>, %163, %cst_43 [1] : vector<8x1024xf32> to vector<8xf32>
      %165 = vector.shape_cast %164 : vector<8xf32> to vector<8x1xf32>
      %166 = arith.mulf %14, %155 : vector<8x1024xf32>
      %cst_44 = arith.constant dense<0.000000e+00> : vector<8xf32>
      %167 = vector.multi_reduction <add>, %166, %cst_44 [1] : vector<8x1024xf32> to vector<8xf32>
      %168 = vector.shape_cast %167 : vector<8xf32> to vector<8x1xf32>
      %169 = arith.mulf %14, %156 : vector<8x1024xf32>
      %cst_45 = arith.constant dense<0.000000e+00> : vector<8xf32>
      %170 = vector.multi_reduction <add>, %169, %cst_45 [1] : vector<8x1024xf32> to vector<8xf32>
      %171 = vector.shape_cast %170 : vector<8xf32> to vector<8x1xf32>
      %cst_46 = arith.constant 2.71828175 : f32
      %172 = vector.broadcast %cst_46 : f32 to vector<8x1xf32>
      %173 = arith.divf %172, %158 : vector<8x1xf32>
      %174 = arith.mulf %160, %173 : vector<8x1xf32>
      %175 = arith.subf %174, %24 : vector<8x1xf32>
      %176 = arith.mulf %162, %173 : vector<8x1xf32>
      %177 = arith.subf %176, %26 : vector<8x1xf32>
      %178 = arith.addf %165, %158 : vector<8x1xf32>
      %179 = arith.mulf %178, %173 : vector<8x1xf32>
      %180 = arith.addf %168, %158 : vector<8x1xf32>
      %181 = arith.mulf %180, %173 : vector<8x1xf32>
      %182 = arith.addf %171, %158 : vector<8x1xf32>
      %183 = arith.mulf %182, %173 : vector<8x1xf32>
      %cst_47 = arith.constant 0.000000e+00 : f32
      %184 = vector.broadcast %cst_47 : f32 to vector<8x1xf32>
      %185 = arith.select %121, %184, %arg7 : vector<8x1xi1>, vector<8x1xf32>
      %186 = arith.select %119, %arg9, %185 : vector<8x1xi1>, vector<8x1xf32>
      %187 = arith.select %121, %184, %arg8 : vector<8x1xi1>, vector<8x1xf32>
      %188 = arith.select %119, %arg10, %187 : vector<8x1xi1>, vector<8x1xf32>
      %189 = arith.select %119, %175, %arg9 : vector<8x1xi1>, vector<8x1xf32>
      %190 = arith.select %119, %177, %arg10 : vector<8x1xi1>, vector<8x1xf32>
      %191 = arith.select %119, %179, %arg11 : vector<8x1xi1>, vector<8x1xf32>
      %192 = arith.select %119, %181, %arg12 : vector<8x1xi1>, vector<8x1xf32>
      %193 = arith.select %119, %183, %arg13 : vector<8x1xi1>, vector<8x1xf32>
      %c1_i32 = arith.constant 1 : i32
      %194 = arith.addi %arg14, %c1_i32 : i32
      %195 = arith.addf %186, %188 : vector<8x1xf32>
      %cst_48 = arith.constant 5.000000e-01 : f32
      %196 = vector.broadcast %cst_48 : f32 to vector<8x1xf32>
      %197 = arith.mulf %195, %196 : vector<8x1xf32>
      %198 = math.absf %197 : vector<8x1xf32>
      %cst_49 = arith.constant 9.99999997E-7 : f32
      %199 = vector.broadcast %cst_49 : f32 to vector<8x1xf32>
      %200 = arith.cmpf ogt, %198, %199 : vector<8x1xf32>
      %201 = arith.andi %7, %200 : vector<8x1xi1>
      %c200_i32_50 = arith.constant 200 : i32
      %202 = arith.cmpi sle, %194, %c200_i32_50 : i32
      %203 = vector.broadcast %202 : i1 to vector<8x1xi1>
      %204 = arith.andi %201, %203 : vector<8x1xi1>
      %205 = arith.mulf %191, %193 : vector<8x1xf32>
      %206 = arith.mulf %192, %192 : vector<8x1xf32>
      %207 = arith.subf %205, %206 : vector<8x1xf32>
      %208 = math.absf %207 : vector<8x1xf32>
      %cst_51 = arith.constant 1.000000e-35 : f32
      %209 = vector.broadcast %cst_51 : f32 to vector<8x1xf32>
      %210 = arith.cmpf oge, %208, %209 : vector<8x1xf32>
      %cst_52 = arith.constant 3.000000e+38 : f32
      %211 = vector.broadcast %cst_52 : f32 to vector<8x1xf32>
      %212 = arith.cmpf ole, %208, %211 : vector<8x1xf32>
      %213 = arith.andi %210, %212 : vector<8x1xi1>
      %cst_53 = arith.constant 1.000000e+00 : f32
      %214 = vector.broadcast %cst_53 : f32 to vector<8x1xf32>
      %215 = arith.select %213, %207, %214 : vector<8x1xi1>, vector<8x1xf32>
      %cst_54 = arith.constant 1.000000e+00 : f32
      %216 = vector.broadcast %cst_54 : f32 to vector<8x1xf32>
      %217 = arith.divf %216, %215 : vector<8x1xf32>
      %218 = arith.mulf %193, %189 : vector<8x1xf32>
      %219 = arith.mulf %192, %190 : vector<8x1xf32>
      %220 = arith.subf %218, %219 : vector<8x1xf32>
      %221 = arith.mulf %220, %217 : vector<8x1xf32>
      %222 = arith.mulf %191, %190 : vector<8x1xf32>
      %223 = arith.mulf %192, %189 : vector<8x1xf32>
      %224 = arith.subf %222, %223 : vector<8x1xf32>
      %225 = arith.mulf %224, %217 : vector<8x1xf32>
      %226 = arith.andi %204, %213 : vector<8x1xi1>
      %cst_55 = arith.constant dense<true> : vector<8x1xi1>
      %227 = arith.xori %213, %cst_55 : vector<8x1xi1>
      %228 = arith.andi %204, %227 : vector<8x1xi1>
      %229 = arith.addf %123, %221 : vector<8x1xf32>
      %230 = arith.select %226, %229, %123 : vector<8x1xi1>, vector<8x1xf32>
      %231 = arith.addf %125, %225 : vector<8x1xf32>
      %232 = arith.select %226, %231, %125 : vector<8x1xi1>, vector<8x1xf32>
      %cst_56 = arith.constant 0.000000e+00 : f32
      %233 = vector.broadcast %cst_56 : f32 to vector<8x1xf32>
      %234 = arith.subf %233, %230 : vector<8x1xf32>
      %235 = arith.mulf %234, %16 : vector<8x1xf32>
      %cst_57 = arith.constant 0.000000e+00 : f32
      %236 = vector.broadcast %cst_57 : f32 to vector<8x1xf32>
      %237 = arith.subf %236, %230 : vector<8x1xf32>
      %238 = arith.mulf %237, %18 : vector<8x1xf32>
      %239 = arith.maximumf %235, %238 : vector<8x1xf32>
      %cst_58 = arith.constant 0.000000e+00 : f32
      %240 = vector.broadcast %cst_58 : f32 to vector<8x1xf32>
      %241 = arith.subf %240, %232 : vector<8x1xf32>
      %242 = arith.mulf %241, %20 : vector<8x1xf32>
      %cst_59 = arith.constant 0.000000e+00 : f32
      %243 = vector.broadcast %cst_59 : f32 to vector<8x1xf32>
      %244 = arith.subf %243, %232 : vector<8x1xf32>
      %245 = arith.mulf %244, %22 : vector<8x1xf32>
      %246 = arith.maximumf %242, %245 : vector<8x1xf32>
      %247 = arith.addf %239, %246 : vector<8x1xf32>
      %cst_60 = arith.constant 0.000000e+00 : f32
      %248 = vector.broadcast %cst_60 : f32 to vector<8x1xf32>
      %249 = arith.subf %248, %230 : vector<8x1xf32>
      %250 = vector.broadcast %249 : vector<8x1xf32> to vector<8x1024xf32>
      %251 = arith.mulf %250, %8 : vector<8x1024xf32>
      %cst_61 = arith.constant 0.000000e+00 : f32
      %252 = vector.broadcast %cst_61 : f32 to vector<8x1xf32>
      %253 = arith.subf %252, %232 : vector<8x1xf32>
      %254 = vector.broadcast %253 : vector<8x1xf32> to vector<8x1024xf32>
      %255 = arith.mulf %254, %14 : vector<8x1024xf32>
      %256 = arith.addf %251, %255 : vector<8x1024xf32>
      %257 = vector.broadcast %247 : vector<8x1xf32> to vector<8x1024xf32>
      %258 = arith.subf %256, %257 : vector<8x1024xf32>
      %259 = math.exp %258 : vector<8x1024xf32>
      %260 = vector.broadcast %9 : vector<1x1024xf32> to vector<8x1024xf32>
      %261 = arith.mulf %259, %260 : vector<8x1024xf32>
      %262 = arith.mulf %8, %261 : vector<8x1024xf32>
      %263 = arith.mulf %14, %261 : vector<8x1024xf32>
      %cst_62 = arith.constant dense<0.000000e+00> : vector<8xf32>
      %264 = vector.multi_reduction <add>, %261, %cst_62 [1] : vector<8x1024xf32> to vector<8xf32>
      %265 = vector.shape_cast %264 : vector<8xf32> to vector<8x1xf32>
      %cst_63 = arith.constant dense<0.000000e+00> : vector<8xf32>
      %266 = vector.multi_reduction <add>, %262, %cst_63 [1] : vector<8x1024xf32> to vector<8xf32>
      %267 = vector.shape_cast %266 : vector<8xf32> to vector<8x1xf32>
      %cst_64 = arith.constant dense<0.000000e+00> : vector<8xf32>
      %268 = vector.multi_reduction <add>, %263, %cst_64 [1] : vector<8x1024xf32> to vector<8xf32>
      %269 = vector.shape_cast %268 : vector<8xf32> to vector<8x1xf32>
      %270 = arith.mulf %8, %262 : vector<8x1024xf32>
      %cst_65 = arith.constant dense<0.000000e+00> : vector<8xf32>
      %271 = vector.multi_reduction <add>, %270, %cst_65 [1] : vector<8x1024xf32> to vector<8xf32>
      %272 = vector.shape_cast %271 : vector<8xf32> to vector<8x1xf32>
      %273 = arith.mulf %14, %262 : vector<8x1024xf32>
      %cst_66 = arith.constant dense<0.000000e+00> : vector<8xf32>
      %274 = vector.multi_reduction <add>, %273, %cst_66 [1] : vector<8x1024xf32> to vector<8xf32>
      %275 = vector.shape_cast %274 : vector<8xf32> to vector<8x1xf32>
      %276 = arith.mulf %14, %263 : vector<8x1024xf32>
      %cst_67 = arith.constant dense<0.000000e+00> : vector<8xf32>
      %277 = vector.multi_reduction <add>, %276, %cst_67 [1] : vector<8x1024xf32> to vector<8xf32>
      %278 = vector.shape_cast %277 : vector<8xf32> to vector<8x1xf32>
      %cst_68 = arith.constant 2.71828175 : f32
      %279 = vector.broadcast %cst_68 : f32 to vector<8x1xf32>
      %280 = arith.divf %279, %265 : vector<8x1xf32>
      %281 = arith.mulf %267, %280 : vector<8x1xf32>
      %282 = arith.subf %281, %24 : vector<8x1xf32>
      %283 = arith.mulf %269, %280 : vector<8x1xf32>
      %284 = arith.subf %283, %26 : vector<8x1xf32>
      %285 = arith.addf %272, %265 : vector<8x1xf32>
      %286 = arith.mulf %285, %280 : vector<8x1xf32>
      %287 = arith.addf %275, %265 : vector<8x1xf32>
      %288 = arith.mulf %287, %280 : vector<8x1xf32>
      %289 = arith.addf %278, %265 : vector<8x1xf32>
      %290 = arith.mulf %289, %280 : vector<8x1xf32>
      %cst_69 = arith.constant 0.000000e+00 : f32
      %291 = vector.broadcast %cst_69 : f32 to vector<8x1xf32>
      %292 = arith.select %228, %291, %186 : vector<8x1xi1>, vector<8x1xf32>
      %293 = arith.select %226, %189, %292 : vector<8x1xi1>, vector<8x1xf32>
      %294 = arith.select %228, %291, %188 : vector<8x1xi1>, vector<8x1xf32>
      %295 = arith.select %226, %190, %294 : vector<8x1xi1>, vector<8x1xf32>
      %296 = arith.select %226, %282, %189 : vector<8x1xi1>, vector<8x1xf32>
      %297 = arith.select %226, %284, %190 : vector<8x1xi1>, vector<8x1xf32>
      %298 = arith.select %226, %286, %191 : vector<8x1xi1>, vector<8x1xf32>
      %299 = arith.select %226, %288, %192 : vector<8x1xi1>, vector<8x1xf32>
      %300 = arith.select %226, %290, %193 : vector<8x1xi1>, vector<8x1xf32>
      %c1_i32_70 = arith.constant 1 : i32
      %301 = arith.addi %194, %c1_i32_70 : i32
      scf.yield %230, %232, %293, %295, %296, %297, %298, %299, %300, %301 : vector<8x1xf32>, vector<8x1xf32>, vector<8x1xf32>, vector<8x1xf32>, vector<8x1xf32>, vector<8x1xf32>, vector<8x1xf32>, vector<8x1xf32>, vector<8x1xf32>, i32
    }
    %c0_24 = arith.constant 0 : index
    %c0_25 = arith.constant 0 : index
    %86 = vector.load %arg4[%c0_24, %c0_25] : memref<8x2xf32, #tpu.memory_space<vmem>>, vector<8x1xf32>
    tpu.vector_store %arg4[%c0_24, %c0_25], %85#0 {strides = array<i32>} : memref<8x2xf32, #tpu.memory_space<vmem>>, vector<8x1xf32>,
    %c0_26 = arith.constant 0 : index
    %c1 = arith.constant 1 : index
    %87 = vector.load %arg4[%c0_26, %c1] : memref<8x2xf32, #tpu.memory_space<vmem>>, vector<8x1xf32>
    tpu.vector_store %arg4[%c0_26, %c1], %85#1 {strides = array<i32>} : memref<8x2xf32, #tpu.memory_space<vmem>>, vector<8x1xf32>,
    return
  }
  func.func @transform_0(%arg0: i32) -> (i32, i32) {
    %c0_i32 = arith.constant 0 : i32
    %c0_i32_0 = arith.constant 0 : i32
    return %arg0, %c0_i32 : i32, i32
  }
  func.func @transform_1(%arg0: i32) -> (i32, i32) {
    %c0_i32 = arith.constant 0 : i32
    %c0_i32_0 = arith.constant 0 : i32
    return %arg0, %c0_i32 : i32, i32
  }
  func.func @transform_2(%arg0: i32) -> (i32, i32) {
    %c0_i32 = arith.constant 0 : i32
    %c0_i32_0 = arith.constant 0 : i32
    %c0_i32_1 = arith.constant 0 : i32
    return %c0_i32, %c0_i32_0 : i32, i32
  }
  func.func @transform_3(%arg0: i32) -> (i32, i32) {
    %c0_i32 = arith.constant 0 : i32
    %c0_i32_0 = arith.constant 0 : i32
    return %arg0, %c0_i32 : i32, i32
  }
}

</mosaic_0001>

<llo_original>
// kernel: tpu_custom_call.1
$region0: #{tpu_custom_call.1}
  #allocation0 [shape = 'u32[]', space=smem, size = 0x4, offset = 0x4, fixed_abs, tag = 'smem constant byte address 0x4 - core index']
  #allocation1 [shape = 'u32[144,128]{1,0:T(1,128)}', space=vmem, size = 0x12000, scoped, tag = 'internal scratch']
  %s0 = inlined_call_operand.hbm [shape: f32[8,8], index: 0, kind: input, shape index: {}]
  %s1 = inlined_call_operand.hbm [shape: f32[8,1024], index: 1, kind: input, shape index: {}]
  %s2 = inlined_call_operand.hbm [shape: f32[1,1024], index: 2, kind: input, shape index: {}]
  %s3 = inlined_call_operand.vmem [shape: f32[8,2], index: 3, kind: output, shape index: {}]
  %s4 = sld [smem:[#allocation0]]
  $region41: #{tpu_custom_call.1} parent=0
    _
  %s6 = ssub.s32 1, %s4
  %s7 = scalar_select 0, %s6, %s4
  $region1: #{tpu_custom_call.1} parent=0
    #allocation2 [shape = 'u8[4096]{0}', space=vmem, size = 0x1000, scoped, tag = 'input window, operand 0, single buffered']
    #allocation3 [shape = 's32[1]{0}', space=sflag, size = 0x4, scoped, tag = 'scoped memory for tpu_custom_call.1']
    #allocation4 [shape = 'u8[32768]{0}', space=vmem, size = 0x8000, scoped, tag = 'input window, operand 1, single buffered']
    #allocation5 [shape = 's32[1]{0}', space=sflag, size = 0x4, scoped, tag = 'scoped memory for tpu_custom_call.1']
    #allocation6 [shape = 'u8[4096]{0}', space=vmem, size = 0x1000, scoped, tag = 'input window, operand 2, single buffered']
    %8 = vsyncpa [#allocation3], 0
    %9 = vsyncpa [#allocation5], 0
    // Predicated region
    $region2: #{tpu_custom_call.1} parent=1 // pred_check
      _
    $region3: #{tpu_custom_call.1} parent=1 // pred_check_branch
      %11 = sbr.rel (0) target = $region5
    $region4: #{tpu_custom_call.1} parent=1 // pred_region
      %s13 = ssub.s32 128, 128
      %14 = vsyncadd [#allocation3], %s13
      %s16 = sshll.u32 [#allocation2], 4
      %s17 = int_to_ptr.vmem [resolvable:$true] %s16
      %19 = dma.hbm_to_vmem [thread:$0]  %s0, 128, %s17, [#allocation3]
    $region5: #{tpu_custom_call.1} parent=1 // pred_fallthru
      _
    // Predicated region
    $region6: #{tpu_custom_call.1} parent=1 // pred_check
      _
    $region7: #{tpu_custom_call.1} parent=1 // pred_check_branch
      %21 = sbr.rel (0) target = $region9
    $region8: #{tpu_custom_call.1} parent=1 // pred_region
      %s23 = ssub.s32 1024, 1024
      %24 = vsyncadd [#allocation5], %s23
      %s26 = sshll.u32 [#allocation4], 4
      %s27 = int_to_ptr.vmem [resolvable:$true] %s26
      %29 = dma.hbm_to_vmem [thread:$0]  %s1, 1024, %s27, [#allocation5]
    $region9: #{tpu_custom_call.1} parent=1 // pred_fallthru
      _
    // Predicated region
    $region10: #{tpu_custom_call.1} parent=1 // pred_check
      _
    $region11: #{tpu_custom_call.1} parent=1 // pred_check_branch
      %31 = sbr.rel (0) target = $region13
    $region12: #{tpu_custom_call.1} parent=1 // pred_region
      %s33 = ssub.s32 128, 128
      %34 = vsyncadd [#allocation5], %s33
      %s36 = sshll.u32 [#allocation6], 4
      %s37 = int_to_ptr.vmem [resolvable:$true] %s36
      %39 = dma.hbm_to_vmem [thread:$0]  %s2, 128, %s37, [#allocation5]
    $region13: #{tpu_custom_call.1} parent=1 // pred_fallthru
      _
    // Predicated region
    $region14: #{tpu_custom_call.1} parent=1 // pred_check
      _
    $region15: #{tpu_custom_call.1} parent=1 // pred_check_branch
      %41 = sbr.rel (0) target = $region17
    $region16: #{tpu_custom_call.1} parent=1 // pred_region
      %42 = dma.done [#allocation3], 128
    $region17: #{tpu_custom_call.1} parent=1 // pred_fallthru
      _
    // Predicated region
    $region18: #{tpu_custom_call.1} parent=1 // pred_check
      _
    $region19: #{tpu_custom_call.1} parent=1 // pred_check_branch
      %44 = sbr.rel (0) target = $region21
    $region20: #{tpu_custom_call.1} parent=1 // pred_region
      %45 = dma.done [#allocation5], 1024
    $region21: #{tpu_custom_call.1} parent=1 // pred_fallthru
      _
    // Predicated region
    $region22: #{tpu_custom_call.1} parent=1 // pred_check
      _
    $region23: #{tpu_custom_call.1} parent=1 // pred_check_branch
      %47 = sbr.rel (0) target = $region25
    $region24: #{tpu_custom_call.1} parent=1 // pred_region
      %48 = dma.done [#allocation5], 128
    $region25: #{tpu_custom_call.1} parent=1 // pred_fallthru
      _
    %v49 = vld [vmem:[#allocation2] sm:$0xff]
    %vm50 = vcmp.gt.f32.partialorder %v49, 0.5
    %v51 = vld [vmem:[#allocation4] sm:$0xff]
    %v52 = vld [vmem:[#allocation4 + $0x8] sm:$0xff]
    %v53 = vld [vmem:[#allocation4 + $0x10] sm:$0xff]
    %v54 = vld [vmem:[#allocation4 + $0x18] sm:$0xff]
    %v55 = vld [vmem:[#allocation4 + $0x20] sm:$0xff]
    %v56 = vld [vmem:[#allocation4 + $0x28] sm:$0xff]
    %v57 = vld [vmem:[#allocation4 + $0x30] sm:$0xff]
    %v58 = vld [vmem:[#allocation4 + $0x38] sm:$0xff]
    %v59 = vld [vmem:[#allocation6] sm:$0xff]
    %61 = vset.pattern.permute.xlu0 0
    %62 = vperm.xlu0 %61, %v49
    %v63 = vpop.permute.xlu0 %62
    %v65 = vsub.f32 %v51, %v63
    %v66 = vsub.f32 %v52, %v63
    %v67 = vsub.f32 %v53, %v63
    %v68 = vsub.f32 %v54, %v63
    %v69 = vsub.f32 %v55, %v63
    %v70 = vsub.f32 %v56, %v63
    %v71 = vsub.f32 %v57, %v63
    %v72 = vsub.f32 %v58, %v63
    %v73 = vmul.f32 %v65, %v65
    %v74 = vmul.f32 %v66, %v66
    %v75 = vmul.f32 %v67, %v67
    %v76 = vmul.f32 %v68, %v68
    %v77 = vmul.f32 %v69, %v69
    %v78 = vmul.f32 %v70, %v70
    %v79 = vmul.f32 %v71, %v71
    %v80 = vmul.f32 %v72, %v72
    %v81 = vmin.f32 %v51, %v55
    %v82 = vmin.f32 %v52, %v56
    %v83 = vmin.f32 %v53, %v57
    %v84 = vmin.f32 %v54, %v58
    %v85 = vmin.f32 %v81, %v82
    %v86 = vmin.f32 %v83, %v84
    %v87 = vmin.f32 %v85, %v86
    %88 = vmin.xlane.f32.xlu0 %v87
    %v89 = vpop.xlane.xlu0 %88
    %v90 = vmax.f32 %v51, %v55
    %v91 = vmax.f32 %v52, %v56
    %v92 = vmax.f32 %v53, %v57
    %v93 = vmax.f32 %v54, %v58
    %v94 = vmax.f32 %v90, %v91
    %v95 = vmax.f32 %v92, %v93
    %v96 = vmax.f32 %v94, %v95
    %97 = vmax.xlane.f32.xlu0 %v96
    %v98 = vpop.xlane.xlu0 %97
    %v99 = vmin.f32 %v73, %v77
    %v100 = vmin.f32 %v74, %v78
    %v101 = vmin.f32 %v75, %v79
    %v102 = vmin.f32 %v76, %v80
    %v103 = vmin.f32 %v99, %v100
    %v104 = vmin.f32 %v101, %v102
    %v105 = vmin.f32 %v103, %v104
    %106 = vmin.xlane.f32.xlu0 %v105
    %v107 = vpop.xlane.xlu0 %106
    %v108 = vmax.f32 %v73, %v77
    %v109 = vmax.f32 %v74, %v78
    %v110 = vmax.f32 %v75, %v79
    %v111 = vmax.f32 %v76, %v80
    %v112 = vmax.f32 %v108, %v109
    %v113 = vmax.f32 %v110, %v111
    %v114 = vmax.f32 %v112, %v113
    %115 = vmax.xlane.f32.xlu0 %v114
    %v116 = vpop.xlane.xlu0 %115
    %v117 = vmul.f32 %v49, 2.7182817
    %v118 = vsub.f32 0.0, %v49
    %v119 = vmul.f32 %v118, %v89
    %v120 = vmul.f32 %v118, %v98
    %v121 = vmax.f32 %v119, %v120
    %v122 = vmul.f32 %v118, %v107
    %v123 = vmul.f32 %v118, %v116
    %v124 = vmax.f32 %v122, %v123
    %126 = vrot.lane.b32.xlu0 %v124, 127
    %v127 = vpop.permute.xlu0 %126
    %v129 = vadd.f32 %v121, %v127
    %131 = vset.pattern.permute.xlu0 2
    %132 = vperm.xlu0 %131, %v118
    %v133 = vpop.permute.xlu0 %132
    %v135 = vmul.f32 %v133, %v51
    %v136 = vmul.f32 %v133, %v52
    %v137 = vmul.f32 %v133, %v53
    %v138 = vmul.f32 %v133, %v54
    %v139 = vmul.f32 %v133, %v55
    %v140 = vmul.f32 %v133, %v56
    %v141 = vmul.f32 %v133, %v57
    %v142 = vmul.f32 %v133, %v58
    %143 = vset.pattern.permute.xlu0 3
    %144 = vperm.xlu0 %143, %v118
    %v145 = vpop.permute.xlu0 %144
    %v147 = vmul.f32 %v145, %v73
    %v148 = vmul.f32 %v145, %v74
    %v149 = vmul.f32 %v145, %v75
    %v150 = vmul.f32 %v145, %v76
    %v151 = vmul.f32 %v145, %v77
    %v152 = vmul.f32 %v145, %v78
    %v153 = vmul.f32 %v145, %v79
    %v154 = vmul.f32 %v145, %v80
    %v155 = vadd.f32 %v135, %v147
    %v156 = vadd.f32 %v136, %v148
    %v157 = vadd.f32 %v137, %v149
    %v158 = vadd.f32 %v138, %v150
    %v159 = vadd.f32 %v139, %v151
    %v160 = vadd.f32 %v140, %v152
    %v161 = vadd.f32 %v141, %v153
    %v162 = vadd.f32 %v142, %v154
    %164 = vset.pattern.permute.xlu0 2
    %165 = vperm.xlu0 %164, %v129
    %v166 = vpop.permute.xlu0 %165
    %v168 = vsub.f32 %v155, %v166
    %v169 = vsub.f32 %v156, %v166
    %v170 = vsub.f32 %v157, %v166
    %v171 = vsub.f32 %v158, %v166
    %v172 = vsub.f32 %v159, %v166
    %v173 = vsub.f32 %v160, %v166
    %v174 = vsub.f32 %v161, %v166
    %v175 = vsub.f32 %v162, %v166
    %v176 = vmul.f32 %v168, 1.442695
    %v177 = vpow.pop %v176
    %v178 = vmul.f32 %v169, 1.442695
    %v179 = vpow.pop %v178
    %v180 = vmul.f32 %v170, 1.442695
    %v181 = vpow.pop %v180
    %v182 = vmul.f32 %v171, 1.442695
    %v183 = vpow.pop %v182
    %v184 = vmul.f32 %v172, 1.442695
    %v185 = vpow.pop %v184
    %v186 = vmul.f32 %v173, 1.442695
    %v187 = vpow.pop %v186
    %v188 = vmul.f32 %v174, 1.442695
    %v189 = vpow.pop %v188
    %v190 = vmul.f32 %v175, 1.442695
    %v191 = vpow.pop %v190
    %v193 = vlaneseq
    %v194 = vshrl.u32 %v193, 7
    %v195 = vsub.s32 0, %v194
    %v196 = vrot.slane %v59, %v195
    %v197 = vlaneseq
    %v198 = vshrl.u32 %v197, 7
    %v199 = vsub.s32 1, %v198
    %v200 = vrot.slane %v59, %v199
    %v201 = vlaneseq
    %v202 = vshrl.u32 %v201, 7
    %v203 = vsub.s32 2, %v202
    %v204 = vrot.slane %v59, %v203
    %v205 = vlaneseq
    %v206 = vshrl.u32 %v205, 7
    %v207 = vsub.s32 3, %v206
    %v208 = vrot.slane %v59, %v207
    %v209 = vlaneseq
    %v210 = vshrl.u32 %v209, 7
    %v211 = vsub.s32 4, %v210
    %v212 = vrot.slane %v59, %v211
    %v213 = vlaneseq
    %v214 = vshrl.u32 %v213, 7
    %v215 = vsub.s32 5, %v214
    %v216 = vrot.slane %v59, %v215
    %v217 = vlaneseq
    %v218 = vshrl.u32 %v217, 7
    %v219 = vsub.s32 6, %v218
    %v220 = vrot.slane %v59, %v219
    %v221 = vlaneseq
    %v222 = vshrl.u32 %v221, 7
    %v223 = vsub.s32 7, %v222
    %v224 = vrot.slane %v59, %v223
    %v233 = vmul.f32 %v177, %v196
    %v234 = vmul.f32 %v179, %v200
    %v235 = vmul.f32 %v181, %v204
    %v236 = vmul.f32 %v183, %v208
    %v237 = vmul.f32 %v185, %v212
    %v238 = vmul.f32 %v187, %v216
    %v239 = vmul.f32 %v189, %v220
    %v240 = vmul.f32 %v191, %v224
    %v241 = vmul.f32 %v51, %v233
    %v242 = vmul.f32 %v52, %v234
    %v243 = vmul.f32 %v53, %v235
    %v244 = vmul.f32 %v54, %v236
    %v245 = vmul.f32 %v55, %v237
    %v246 = vmul.f32 %v56, %v238
    %v247 = vmul.f32 %v57, %v239
    %v248 = vmul.f32 %v58, %v240
    %v249 = vmul.f32 %v73, %v233
    %v250 = vmul.f32 %v74, %v234
    %v251 = vmul.f32 %v75, %v235
    %v252 = vmul.f32 %v76, %v236
    %v253 = vmul.f32 %v77, %v237
    %v254 = vmul.f32 %v78, %v238
    %v255 = vmul.f32 %v79, %v239
    %v256 = vmul.f32 %v80, %v240
    %v257 = vadd.f32 %v233, %v234
    %v258 = vadd.f32 %v257, %v235
    %v259 = vadd.f32 %v258, %v236
    %v260 = vadd.f32 %v259, %v237
    %v261 = vadd.f32 %v260, %v238
    %v262 = vadd.f32 %v261, %v239
    %v263 = vadd.f32 %v262, %v240
    %264 = vadd.xlane.f32.xlu0 %v263
    %v265 = vpop.xlane.xlu0 %264
    %v266 = vadd.f32 %v241, %v242
    %v267 = vadd.f32 %v266, %v243
    %v268 = vadd.f32 %v267, %v244
    %v269 = vadd.f32 %v268, %v245
    %v270 = vadd.f32 %v269, %v246
    %v271 = vadd.f32 %v270, %v247
    %v272 = vadd.f32 %v271, %v248
    %273 = vadd.xlane.f32.xlu0 %v272
    %v274 = vpop.xlane.xlu0 %273
    %v275 = vadd.f32 %v249, %v250
    %v276 = vadd.f32 %v275, %v251
    %v277 = vadd.f32 %v276, %v252
    %v278 = vadd.f32 %v277, %v253
    %v279 = vadd.f32 %v278, %v254
    %v280 = vadd.f32 %v279, %v255
    %v281 = vadd.f32 %v280, %v256
    %282 = vadd.xlane.f32.xlu0 %v281
    %v283 = vpop.xlane.xlu0 %282
    %v284 = vmul.f32 %v51, %v241
    %v285 = vmul.f32 %v52, %v242
    %v286 = vmul.f32 %v53, %v243
    %v287 = vmul.f32 %v54, %v244
    %v288 = vmul.f32 %v55, %v245
    %v289 = vmul.f32 %v56, %v246
    %v290 = vmul.f32 %v57, %v247
    %v291 = vmul.f32 %v58, %v248
    %v292 = vadd.f32 %v284, %v285
    %v293 = vadd.f32 %v292, %v286
    %v294 = vadd.f32 %v293, %v287
    %v295 = vadd.f32 %v294, %v288
    %v296 = vadd.f32 %v295, %v289
    %v297 = vadd.f32 %v296, %v290
    %v298 = vadd.f32 %v297, %v291
    %299 = vadd.xlane.f32.xlu0 %v298
    %v300 = vpop.xlane.xlu0 %299
    %v301 = vmul.f32 %v73, %v241
    %v302 = vmul.f32 %v74, %v242
    %v303 = vmul.f32 %v75, %v243
    %v304 = vmul.f32 %v76, %v244
    %v305 = vmul.f32 %v77, %v245
    %v306 = vmul.f32 %v78, %v246
    %v307 = vmul.f32 %v79, %v247
    %v308 = vmul.f32 %v80, %v248
    %v309 = vadd.f32 %v301, %v302
    %v310 = vadd.f32 %v309, %v303
    %v311 = vadd.f32 %v310, %v304
    %v312 = vadd.f32 %v311, %v305
    %v313 = vadd.f32 %v312, %v306
    %v314 = vadd.f32 %v313, %v307
    %v315 = vadd.f32 %v314, %v308
    %316 = vadd.xlane.f32.xlu0 %v315
    %v317 = vpop.xlane.xlu0 %316
    %v318 = vmul.f32 %v73, %v249
    %v319 = vmul.f32 %v74, %v250
    %v320 = vmul.f32 %v75, %v251
    %v321 = vmul.f32 %v76, %v252
    %v322 = vmul.f32 %v77, %v253
    %v323 = vmul.f32 %v78, %v254
    %v324 = vmul.f32 %v79, %v255
    %v325 = vmul.f32 %v80, %v256
    %v326 = vadd.f32 %v318, %v319
    %v327 = vadd.f32 %v326, %v320
    %v328 = vadd.f32 %v327, %v321
    %v329 = vadd.f32 %v328, %v322
    %v330 = vadd.f32 %v329, %v323
    %v331 = vadd.f32 %v330, %v324
    %v332 = vadd.f32 %v331, %v325
    %333 = vadd.xlane.f32.xlu0 %v332
    %v334 = vpop.xlane.xlu0 %333
    %v335 = vrcp.pop %v265
    %v336 = vmul.f32 2.7182817, %v335
    %v337 = vmul.f32 %v274, %v336
    %v338 = vsub.f32 %v337, %v117
    %v339 = vmul.f32 %v283, %v336
    %v340 = vsub.f32 %v339, %v117
    %v341 = vadd.f32 %v300, %v265
    %v342 = vmul.f32 %v341, %v336
    %v343 = vadd.f32 %v317, %v265
    %v344 = vmul.f32 %v343, %v336
    %v345 = vadd.f32 %v334, %v265
    %v346 = vmul.f32 %v345, %v336
    %347 = vrot.lane.b32.xlu0 %v49, 126
    %v348 = vpop.permute.xlu0 %347
    %350 = vrot.lane.b32.xlu0 %v49, 125
    %v351 = vpop.permute.xlu0 %350
    %354 = vrot.lane.b32.xlu0 %v340, 127
    %v355 = vpop.permute.xlu0 %354
    // While loop
    $region26: #{tpu_custom_call.1} parent=1 // loop_pre_header
      _
    $region27: #{tpu_custom_call.1} parent=1 // loop_header
      %v358 = vphi %v348, %v922
      %v359 = vphi %v351, %v926
      %v360 = vphi %v338, %v930
      %v361 = vphi %v355, %v934
      %v362 = vphi %v338, %v938
      %v363 = vphi %v355, %v942
      %v364 = vphi %v342, %v916
      %v365 = vphi %v344, %v917
      %v366 = vphi %v346, %v918
      %s367 = sphi 0, %s919
      %v368 = vadd.f32 %v360, %v361
      %v369 = vmul.f32 %v368, 0.5
      %v370 = vand.u32 2147483647, %v369
      %vm371 = vcmp.gt.f32.partialorder %v370, 1e-06
      %v372 = vsel %vm371, 1, 0
      %373 = vrot.lane.b32.xlu0 %v372, 4
      %v374 = vpop.permute.xlu0 %373
      %vm375 = vcmp.ne.s32.totalorder %v374, 0
      %vm376 = vmand %vm50, %vm375
      %p377 = scmp.le.s32.totalorder %s367, 200
      %s378 = scalar_select %p377, 1, 0
      %v379 = vstv %s378
      %vm380 = vcmp.eq.s32.totalorder %v379, 1
      %vm381 = vmand %vm376, %vm380
      %v382 = vsel %vm381, 1.0, 0.0
      %vm383 = vcmask 39968
      %v384 = vsel %vm383, %v382, -inf
      %385 = vmax.xlane.f32.xlu0 %v384
      %v386 = vpop.xlane.xlu0 %385
      %v387 = vrot.slane %v386, 4
      %v388 = vmax.f32 %v386, %v387
      %v389 = vrot.slane %v388, 2
      %v390 = vmax.f32 %v388, %v389
      %v391 = vrot.slane %v390, 1
      %v392 = vmax.f32 %v390, %v391
      %s393 = vtos %v392
      %p394 = scmp.gt.f32.partialorder %s393, 0.0
      %p395 = pneg %p394
    $region28: #{tpu_custom_call.1} parent=1 // loop_header_branch
      %397 = sbr.rel (%p395) target = $region32
    $region29: #{tpu_custom_call.1} parent=1 // loop_body
      %v398 = vadd.f32 %v360, %v361
      %v399 = vmul.f32 %v398, 0.5
      %v400 = vand.u32 2147483647, %v399
      %vm401 = vcmp.gt.f32.partialorder %v400, 1e-06
      %v402 = vsel %vm401, 1, 0
      %403 = vrot.lane.b32.xlu0 %v402, 4
      %v404 = vpop.permute.xlu0 %403
      %vm405 = vcmp.ne.s32.totalorder %v404, 0
      %vm406 = vmand %vm50, %vm405
      %p407 = scmp.le.s32.totalorder %s367, 200
      %s408 = scalar_select %p407, 1, 0
      %v409 = vstv %s408
      %vm410 = vcmp.eq.s32.totalorder %v409, 1
      %vm411 = vmand %vm406, %vm410
      %v412 = vmul.f32 %v364, %v366
      %v413 = vmul.f32 %v365, %v365
      %v414 = vsub.f32 %v412, %v413
      %v415 = vand.u32 2147483647, %v414
      %vm416 = vcmp.ge.f32.partialorder %v415, 1e-35
      %vm417 = vcmp.le.f32.partialorder %v415, 3e+38
      %vm418 = vmand %vm416, %vm417
      %v419 = vsel %vm418, %v414, 1.0
      %v420 = vrcp.pop %v419
      %v421 = vmul.f32 1.0, %v420
      %423 = vrot.lane.b32.xlu0 %v362, 4
      %v424 = vpop.permute.xlu0 %423
      %v426 = vmul.f32 %v366, %v424
      %428 = vrot.lane.b32.xlu0 %v363, 4
      %v429 = vpop.permute.xlu0 %428
      %v431 = vmul.f32 %v365, %v429
      %v432 = vsub.f32 %v426, %v431
      %v433 = vmul.f32 %v432, %v421
      %v434 = vmul.f32 %v364, %v429
      %v435 = vmul.f32 %v365, %v424
      %v436 = vsub.f32 %v434, %v435
      %v437 = vmul.f32 %v436, %v421
      %vm438 = vmand %vm411, %vm418
      %vm439 = vmxor %vm418, 1
      %vm440 = vmand %vm411, %vm439
      %442 = vrot.lane.b32.xlu0 %v433, 124
      %v443 = vpop.permute.xlu0 %442
      %v445 = vadd.f32 %v358, %v443
      %447 = vrot.lane.b32.xlu0 %v445, 4
      %v448 = vpop.permute.xlu0 %447
      %451 = vrot.lane.b32.xlu0 %v358, 4
      %v452 = vpop.permute.xlu0 %451
      %v454 = vsel %vm438, %v448, %v452
      %456 = vrot.lane.b32.xlu0 %v437, 124
      %v457 = vpop.permute.xlu0 %456
      %v459 = vadd.f32 %v359, %v457
      %461 = vrot.lane.b32.xlu0 %v459, 4
      %v462 = vpop.permute.xlu0 %461
      %465 = vrot.lane.b32.xlu0 %v359, 4
      %v466 = vpop.permute.xlu0 %465
      %v468 = vsel %vm438, %v462, %v466
      %v469 = vsub.f32 0.0, %v454
      %v470 = vmul.f32 %v469, %v89
      %v471 = vmul.f32 %v469, %v98
      %v472 = vmax.f32 %v470, %v471
      %v473 = vsub.f32 0.0, %v468
      %v474 = vmul.f32 %v473, %v107
      %v475 = vmul.f32 %v473, %v116
      %v476 = vmax.f32 %v474, %v475
      %v477 = vadd.f32 %v472, %v476
      %479 = vset.pattern.permute.xlu0 4
      %480 = vperm.xlu0 %479, %v469
      %v481 = vpop.permute.xlu0 %480
      %v483 = vmul.f32 %v481, %v51
      %v484 = vmul.f32 %v481, %v52
      %v485 = vmul.f32 %v481, %v53
      %v486 = vmul.f32 %v481, %v54
      %v487 = vmul.f32 %v481, %v55
      %v488 = vmul.f32 %v481, %v56
      %v489 = vmul.f32 %v481, %v57
      %v490 = vmul.f32 %v481, %v58
      %492 = vset.pattern.permute.xlu0 4
      %493 = vperm.xlu0 %492, %v473
      %v494 = vpop.permute.xlu0 %493
      %v496 = vmul.f32 %v494, %v73
      %v497 = vmul.f32 %v494, %v74
      %v498 = vmul.f32 %v494, %v75
      %v499 = vmul.f32 %v494, %v76
      %v500 = vmul.f32 %v494, %v77
      %v501 = vmul.f32 %v494, %v78
      %v502 = vmul.f32 %v494, %v79
      %v503 = vmul.f32 %v494, %v80
      %v504 = vadd.f32 %v483, %v496
      %v505 = vadd.f32 %v484, %v497
      %v506 = vadd.f32 %v485, %v498
      %v507 = vadd.f32 %v486, %v499
      %v508 = vadd.f32 %v487, %v500
      %v509 = vadd.f32 %v488, %v501
      %v510 = vadd.f32 %v489, %v502
      %v511 = vadd.f32 %v490, %v503
      %513 = vset.pattern.permute.xlu0 4
      %514 = vperm.xlu0 %513, %v477
      %v515 = vpop.permute.xlu0 %514
      %v517 = vsub.f32 %v504, %v515
      %v518 = vsub.f32 %v505, %v515
      %v519 = vsub.f32 %v506, %v515
      %v520 = vsub.f32 %v507, %v515
      %v521 = vsub.f32 %v508, %v515
      %v522 = vsub.f32 %v509, %v515
      %v523 = vsub.f32 %v510, %v515
      %v524 = vsub.f32 %v511, %v515
      %v525 = vmul.f32 %v517, 1.442695
      %v526 = vpow.pop %v525
      %v527 = vmul.f32 %v518, 1.442695
      %v528 = vpow.pop %v527
      %v529 = vmul.f32 %v519, 1.442695
      %v530 = vpow.pop %v529
      %v531 = vmul.f32 %v520, 1.442695
      %v532 = vpow.pop %v531
      %v533 = vmul.f32 %v521, 1.442695
      %v534 = vpow.pop %v533
      %v535 = vmul.f32 %v522, 1.442695
      %v536 = vpow.pop %v535
      %v537 = vmul.f32 %v523, 1.442695
      %v538 = vpow.pop %v537
      %v539 = vmul.f32 %v524, 1.442695
      %v540 = vpow.pop %v539
      %v541 = vmul.f32 %v526, %v196
      %v542 = vmul.f32 %v528, %v200
      %v543 = vmul.f32 %v530, %v204
      %v544 = vmul.f32 %v532, %v208
      %v545 = vmul.f32 %v534, %v212
      %v546 = vmul.f32 %v536, %v216
      %v547 = vmul.f32 %v538, %v220
      %v548 = vmul.f32 %v540, %v224
      %v549 = vmul.f32 %v51, %v541
      %v550 = vmul.f32 %v52, %v542
      %v551 = vmul.f32 %v53, %v543
      %v552 = vmul.f32 %v54, %v544
      %v553 = vmul.f32 %v55, %v545
      %v554 = vmul.f32 %v56, %v546
      %v555 = vmul.f32 %v57, %v547
      %v556 = vmul.f32 %v58, %v548
      %v557 = vmul.f32 %v73, %v541
      %v558 = vmul.f32 %v74, %v542
      %v559 = vmul.f32 %v75, %v543
      %v560 = vmul.f32 %v76, %v544
      %v561 = vmul.f32 %v77, %v545
      %v562 = vmul.f32 %v78, %v546
      %v563 = vmul.f32 %v79, %v547
      %v564 = vmul.f32 %v80, %v548
      %v565 = vadd.f32 %v541, %v542
      %v566 = vadd.f32 %v565, %v543
      %v567 = vadd.f32 %v566, %v544
      %v568 = vadd.f32 %v567, %v545
      %v569 = vadd.f32 %v568, %v546
      %v570 = vadd.f32 %v569, %v547
      %v571 = vadd.f32 %v570, %v548
      %572 = vadd.xlane.f32.xlu0 %v571
      %v573 = vpop.xlane.xlu0 %572
      %v574 = vadd.f32 %v549, %v550
      %v575 = vadd.f32 %v574, %v551
      %v576 = vadd.f32 %v575, %v552
      %v577 = vadd.f32 %v576, %v553
      %v578 = vadd.f32 %v577, %v554
      %v579 = vadd.f32 %v578, %v555
      %v580 = vadd.f32 %v579, %v556
      %581 = vadd.xlane.f32.xlu0 %v580
      %v582 = vpop.xlane.xlu0 %581
      %v583 = vadd.f32 %v557, %v558
      %v584 = vadd.f32 %v583, %v559
      %v585 = vadd.f32 %v584, %v560
      %v586 = vadd.f32 %v585, %v561
      %v587 = vadd.f32 %v586, %v562
      %v588 = vadd.f32 %v587, %v563
      %v589 = vadd.f32 %v588, %v564
      %590 = vadd.xlane.f32.xlu0 %v589
      %v591 = vpop.xlane.xlu0 %590
      %v592 = vmul.f32 %v51, %v549
      %v593 = vmul.f32 %v52, %v550
      %v594 = vmul.f32 %v53, %v551
      %v595 = vmul.f32 %v54, %v552
      %v596 = vmul.f32 %v55, %v553
      %v597 = vmul.f32 %v56, %v554
      %v598 = vmul.f32 %v57, %v555
      %v599 = vmul.f32 %v58, %v556
      %v600 = vadd.f32 %v592, %v593
      %v601 = vadd.f32 %v600, %v594
      %v602 = vadd.f32 %v601, %v595
      %v603 = vadd.f32 %v602, %v596
      %v604 = vadd.f32 %v603, %v597
      %v605 = vadd.f32 %v604, %v598
      %v606 = vadd.f32 %v605, %v599
      %607 = vadd.xlane.f32.xlu0 %v606
      %v608 = vpop.xlane.xlu0 %607
      %v609 = vmul.f32 %v73, %v549
      %v610 = vmul.f32 %v74, %v550
      %v611 = vmul.f32 %v75, %v551
      %v612 = vmul.f32 %v76, %v552
      %v613 = vmul.f32 %v77, %v553
      %v614 = vmul.f32 %v78, %v554
      %v615 = vmul.f32 %v79, %v555
      %v616 = vmul.f32 %v80, %v556
      %v617 = vadd.f32 %v609, %v610
      %v618 = vadd.f32 %v617, %v611
      %v619 = vadd.f32 %v618, %v612
      %v620 = vadd.f32 %v619, %v613
      %v621 = vadd.f32 %v620, %v614
      %v622 = vadd.f32 %v621, %v615
      %v623 = vadd.f32 %v622, %v616
      %624 = vadd.xlane.f32.xlu0 %v623
      %v625 = vpop.xlane.xlu0 %624
      %v626 = vmul.f32 %v73, %v557
      %v627 = vmul.f32 %v74, %v558
      %v628 = vmul.f32 %v75, %v559
      %v629 = vmul.f32 %v76, %v560
      %v630 = vmul.f32 %v77, %v561
      %v631 = vmul.f32 %v78, %v562
      %v632 = vmul.f32 %v79, %v563
      %v633 = vmul.f32 %v80, %v564
      %v634 = vadd.f32 %v626, %v627
      %v635 = vadd.f32 %v634, %v628
      %v636 = vadd.f32 %v635, %v629
      %v637 = vadd.f32 %v636, %v630
      %v638 = vadd.f32 %v637, %v631
      %v639 = vadd.f32 %v638, %v632
      %v640 = vadd.f32 %v639, %v633
      %641 = vadd.xlane.f32.xlu0 %v640
      %v642 = vpop.xlane.xlu0 %641
      %v643 = vrcp.pop %v573
      %v644 = vmul.f32 2.7182817, %v643
      %v645 = vmul.f32 %v582, %v644
      %v646 = vsub.f32 %v645, %v117
      %v647 = vmul.f32 %v591, %v644
      %v648 = vsub.f32 %v647, %v117
      %v649 = vadd.f32 %v608, %v573
      %v650 = vmul.f32 %v649, %v644
      %v651 = vadd.f32 %v625, %v573
      %v652 = vmul.f32 %v651, %v644
      %v653 = vadd.f32 %v642, %v573
      %v654 = vmul.f32 %v653, %v644
      %656 = vrot.lane.b32.xlu0 %v360, 4
      %v657 = vpop.permute.xlu0 %656
      %v659 = vsel %vm440, 0.0, %v657
      %v660 = vsel %vm438, %v424, %v659
      %662 = vrot.lane.b32.xlu0 %v361, 4
      %v663 = vpop.permute.xlu0 %662
      %v665 = vsel %vm440, 0.0, %v663
      %v666 = vsel %vm438, %v429, %v665
      %668 = vrot.lane.b32.xlu0 %v646, 4
      %v669 = vpop.permute.xlu0 %668
      %v671 = vsel %vm438, %v669, %v424
      %673 = vrot.lane.b32.xlu0 %v648, 3
      %v674 = vpop.permute.xlu0 %673
      %v676 = vsel %vm438, %v674, %v429
      %v677 = vsel %vm438, %v650, %v364
      %v678 = vsel %vm438, %v652, %v365
      %v679 = vsel %vm438, %v654, %v366
      %s680 = sadd.s32 %s367, 1
      %v681 = vadd.f32 %v660, %v666
      %v682 = vmul.f32 %v681, 0.5
      %v683 = vand.u32 2147483647, %v682
      %vm684 = vcmp.gt.f32.partialorder %v683, 1e-06
      %vm685 = vmand %vm50, %vm684
      %p686 = scmp.le.s32.totalorder %s680, 200
      %s687 = scalar_select %p686, 1, 0
      %v688 = vstv %s687
      %vm689 = vcmp.eq.s32.totalorder %v688, 1
      %vm690 = vmand %vm685, %vm689
      %v691 = vmul.f32 %v677, %v679
      %v692 = vmul.f32 %v678, %v678
      %v693 = vsub.f32 %v691, %v692
      %v694 = vand.u32 2147483647, %v693
      %vm695 = vcmp.ge.f32.partialorder %v694, 1e-35
      %vm696 = vcmp.le.f32.partialorder %v694, 3e+38
      %vm697 = vmand %vm695, %vm696
      %v698 = vsel %vm697, %v693, 1.0
      %v699 = vrcp.pop %v698
      %v700 = vmul.f32 1.0, %v699
      %v701 = vmul.f32 %v679, %v671
      %v702 = vmul.f32 %v678, %v676
      %v703 = vsub.f32 %v701, %v702
      %v704 = vmul.f32 %v703, %v700
      %v705 = vmul.f32 %v677, %v676
      %v706 = vmul.f32 %v678, %v671
      %v707 = vsub.f32 %v705, %v706
      %v708 = vmul.f32 %v707, %v700
      %vm709 = vmand %vm690, %vm697
      %vm710 = vmxor %vm697, 1
      %vm711 = vmand %vm690, %vm710
      %v712 = vadd.f32 %v454, %v704
      %v713 = vsel %vm709, %v712, %v454
      %v714 = vadd.f32 %v468, %v708
      %v715 = vsel %vm709, %v714, %v468
      %v716 = vsub.f32 0.0, %v713
      %v717 = vmul.f32 %v716, %v89
      %v718 = vmul.f32 %v716, %v98
      %v719 = vmax.f32 %v717, %v718
      %v720 = vsub.f32 0.0, %v715
      %v721 = vmul.f32 %v720, %v107
      %v722 = vmul.f32 %v720, %v116
      %v723 = vmax.f32 %v721, %v722
      %v724 = vadd.f32 %v719, %v723
      %726 = vset.pattern.permute.xlu0 4
      %727 = vperm.xlu0 %726, %v716
      %v728 = vpop.permute.xlu0 %727
      %v730 = vmul.f32 %v728, %v51
      %v731 = vmul.f32 %v728, %v52
      %v732 = vmul.f32 %v728, %v53
      %v733 = vmul.f32 %v728, %v54
      %v734 = vmul.f32 %v728, %v55
      %v735 = vmul.f32 %v728, %v56
      %v736 = vmul.f32 %v728, %v57
      %v737 = vmul.f32 %v728, %v58
      %739 = vset.pattern.permute.xlu0 4
      %740 = vperm.xlu0 %739, %v720
      %v741 = vpop.permute.xlu0 %740
      %v743 = vmul.f32 %v741, %v73
      %v744 = vmul.f32 %v741, %v74
      %v745 = vmul.f32 %v741, %v75
      %v746 = vmul.f32 %v741, %v76
      %v747 = vmul.f32 %v741, %v77
      %v748 = vmul.f32 %v741, %v78
      %v749 = vmul.f32 %v741, %v79
      %v750 = vmul.f32 %v741, %v80
      %v751 = vadd.f32 %v730, %v743
      %v752 = vadd.f32 %v731, %v744
      %v753 = vadd.f32 %v732, %v745
      %v754 = vadd.f32 %v733, %v746
      %v755 = vadd.f32 %v734, %v747
      %v756 = vadd.f32 %v735, %v748
      %v757 = vadd.f32 %v736, %v749
      %v758 = vadd.f32 %v737, %v750
      %760 = vset.pattern.permute.xlu0 4
      %761 = vperm.xlu0 %760, %v724
      %v762 = vpop.permute.xlu0 %761
      %v764 = vsub.f32 %v751, %v762
      %v765 = vsub.f32 %v752, %v762
      %v766 = vsub.f32 %v753, %v762
      %v767 = vsub.f32 %v754, %v762
      %v768 = vsub.f32 %v755, %v762
      %v769 = vsub.f32 %v756, %v762
      %v770 = vsub.f32 %v757, %v762
      %v771 = vsub.f32 %v758, %v762
      %v772 = vmul.f32 %v764, 1.442695
      %v773 = vpow.pop %v772
      %v774 = vmul.f32 %v765, 1.442695
      %v775 = vpow.pop %v774
      %v776 = vmul.f32 %v766, 1.442695
      %v777 = vpow.pop %v776
      %v778 = vmul.f32 %v767, 1.442695
      %v779 = vpow.pop %v778
      %v780 = vmul.f32 %v768, 1.442695
      %v781 = vpow.pop %v780
      %v782 = vmul.f32 %v769, 1.442695
      %v783 = vpow.pop %v782
      %v784 = vmul.f32 %v770, 1.442695
      %v785 = vpow.pop %v784
      %v786 = vmul.f32 %v771, 1.442695
      %v787 = vpow.pop %v786
      %v788 = vmul.f32 %v773, %v196
      %v789 = vmul.f32 %v775, %v200
      %v790 = vmul.f32 %v777, %v204
      %v791 = vmul.f32 %v779, %v208
      %v792 = vmul.f32 %v781, %v212
      %v793 = vmul.f32 %v783, %v216
      %v794 = vmul.f32 %v785, %v220
      %v795 = vmul.f32 %v787, %v224
      %v796 = vmul.f32 %v51, %v788
      %v797 = vmul.f32 %v52, %v789
      %v798 = vmul.f32 %v53, %v790
      %v799 = vmul.f32 %v54, %v791
      %v800 = vmul.f32 %v55, %v792
      %v801 = vmul.f32 %v56, %v793
      %v802 = vmul.f32 %v57, %v794
      %v803 = vmul.f32 %v58, %v795
      %v804 = vmul.f32 %v73, %v788
      %v805 = vmul.f32 %v74, %v789
      %v806 = vmul.f32 %v75, %v790
      %v807 = vmul.f32 %v76, %v791
      %v808 = vmul.f32 %v77, %v792
      %v809 = vmul.f32 %v78, %v793
      %v810 = vmul.f32 %v79, %v794
      %v811 = vmul.f32 %v80, %v795
      %v812 = vadd.f32 %v788, %v789
      %v813 = vadd.f32 %v812, %v790
      %v814 = vadd.f32 %v813, %v791
      %v815 = vadd.f32 %v814, %v792
      %v816 = vadd.f32 %v815, %v793
      %v817 = vadd.f32 %v816, %v794
      %v818 = vadd.f32 %v817, %v795
      %819 = vadd.xlane.f32.xlu0 %v818
      %v820 = vpop.xlane.xlu0 %819
      %v821 = vadd.f32 %v796, %v797
      %v822 = vadd.f32 %v821, %v798
      %v823 = vadd.f32 %v822, %v799
      %v824 = vadd.f32 %v823, %v800
      %v825 = vadd.f32 %v824, %v801
      %v826 = vadd.f32 %v825, %v802
      %v827 = vadd.f32 %v826, %v803
      %828 = vadd.xlane.f32.xlu0 %v827
      %v829 = vpop.xlane.xlu0 %828
      %v830 = vadd.f32 %v804, %v805
      %v831 = vadd.f32 %v830, %v806
      %v832 = vadd.f32 %v831, %v807
      %v833 = vadd.f32 %v832, %v808
      %v834 = vadd.f32 %v833, %v809
      %v835 = vadd.f32 %v834, %v810
      %v836 = vadd.f32 %v835, %v811
      %837 = vadd.xlane.f32.xlu0 %v836
      %v838 = vpop.xlane.xlu0 %837
      %v839 = vmul.f32 %v51, %v796
      %v840 = vmul.f32 %v52, %v797
      %v841 = vmul.f32 %v53, %v798
      %v842 = vmul.f32 %v54, %v799
      %v843 = vmul.f32 %v55, %v800
      %v844 = vmul.f32 %v56, %v801
      %v845 = vmul.f32 %v57, %v802
      %v846 = vmul.f32 %v58, %v803
      %v847 = vadd.f32 %v839, %v840
      %v848 = vadd.f32 %v847, %v841
      %v849 = vadd.f32 %v848, %v842
      %v850 = vadd.f32 %v849, %v843
      %v851 = vadd.f32 %v850, %v844
      %v852 = vadd.f32 %v851, %v845
      %v853 = vadd.f32 %v852, %v846
      %854 = vadd.xlane.f32.xlu0 %v853
      %v855 = vpop.xlane.xlu0 %854
      %v856 = vmul.f32 %v73, %v796
      %v857 = vmul.f32 %v74, %v797
      %v858 = vmul.f32 %v75, %v798
      %v859 = vmul.f32 %v76, %v799
      %v860 = vmul.f32 %v77, %v800
      %v861 = vmul.f32 %v78, %v801
      %v862 = vmul.f32 %v79, %v802
      %v863 = vmul.f32 %v80, %v803
      %v864 = vadd.f32 %v856, %v857
      %v865 = vadd.f32 %v864, %v858
      %v866 = vadd.f32 %v865, %v859
      %v867 = vadd.f32 %v866, %v860
      %v868 = vadd.f32 %v867, %v861
      %v869 = vadd.f32 %v868, %v862
      %v870 = vadd.f32 %v869, %v863
      %871 = vadd.xlane.f32.xlu0 %v870
      %v872 = vpop.xlane.xlu0 %871
      %v873 = vmul.f32 %v73, %v804
      %v874 = vmul.f32 %v74, %v805
      %v875 = vmul.f32 %v75, %v806
      %v876 = vmul.f32 %v76, %v807
      %v877 = vmul.f32 %v77, %v808
      %v878 = vmul.f32 %v78, %v809
      %v879 = vmul.f32 %v79, %v810
      %v880 = vmul.f32 %v80, %v811
      %v881 = vadd.f32 %v873, %v874
      %v882 = vadd.f32 %v881, %v875
      %v883 = vadd.f32 %v882, %v876
      %v884 = vadd.f32 %v883, %v877
      %v885 = vadd.f32 %v884, %v878
      %v886 = vadd.f32 %v885, %v879
      %v887 = vadd.f32 %v886, %v880
      %888 = vadd.xlane.f32.xlu0 %v887
      %v889 = vpop.xlane.xlu0 %888
      %v890 = vrcp.pop %v820
      %v891 = vmul.f32 2.7182817, %v890
      %v892 = vmul.f32 %v829, %v891
      %v893 = vsub.f32 %v892, %v117
      %v894 = vmul.f32 %v838, %v891
      %v895 = vsub.f32 %v894, %v117
      %v896 = vadd.f32 %v855, %v820
      %v897 = vmul.f32 %v896, %v891
      %v898 = vadd.f32 %v872, %v820
      %v899 = vmul.f32 %v898, %v891
      %v900 = vadd.f32 %v889, %v820
      %v901 = vmul.f32 %v900, %v891
      %v902 = vsel %vm711, 0.0, %v660
      %v903 = vsel %vm709, %v671, %v902
      %v904 = vsel %vm711, 0.0, %v666
      %v905 = vsel %vm709, %v676, %v904
      %907 = vrot.lane.b32.xlu0 %v893, 4
      %v908 = vpop.permute.xlu0 %907
      %v910 = vsel %vm709, %v908, %v671
      %912 = vrot.lane.b32.xlu0 %v895, 3
      %v913 = vpop.permute.xlu0 %912
      %v915 = vsel %vm709, %v913, %v676
      %v916 = vsel %vm709, %v897, %v677
      %v917 = vsel %vm709, %v899, %v678
      %v918 = vsel %vm709, %v901, %v679
      %s919 = sadd.s32 %s367, 2
      %921 = vrot.lane.b32.xlu0 %v713, 124
      %v922 = vpop.permute.xlu0 %921
      %925 = vrot.lane.b32.xlu0 %v715, 124
      %v926 = vpop.permute.xlu0 %925
      %929 = vrot.lane.b32.xlu0 %v903, 124
      %v930 = vpop.permute.xlu0 %929
      %933 = vrot.lane.b32.xlu0 %v905, 124
      %v934 = vpop.permute.xlu0 %933
      %937 = vrot.lane.b32.xlu0 %v910, 124
      %v938 = vpop.permute.xlu0 %937
      %941 = vrot.lane.b32.xlu0 %v915, 124
      %v942 = vpop.permute.xlu0 %941
    $region30: #{tpu_custom_call.1} parent=1 // loop_footer
      _
    $region31: #{tpu_custom_call.1} parent=1 // loop_footer_branch
      %357 = sbr.rel target = $region27
    $region32: #{tpu_custom_call.1} parent=1 // loop_exit
      _
    %vm944 = vcmask 7168
    %945 = vst.msk [vmem:[%s3] sm:$0xff] %vm944, %v358
    %947 = vrot.lane.b32.xlu0 %v359, 1
    %v948 = vpop.permute.xlu0 %947
    %vm950 = vcmask 15368
    %951 = vst.msk [vmem:[%s3] sm:$0xff] %vm950, %v948
    // Predicated region
    $region33: #{tpu_custom_call.1} parent=1 // pred_check
      _
    $region34: #{tpu_custom_call.1} parent=1 // pred_check_branch
      %953 = sbr.rel (0) target = $region36
    $region35: #{tpu_custom_call.1} parent=1 // pred_region
      _
    $region36: #{tpu_custom_call.1} parent=1 // pred_fallthru
      _
    // Predicated region
    $region37: #{tpu_custom_call.1} parent=1 // pred_check
      _
    $region38: #{tpu_custom_call.1} parent=1 // pred_check_branch
      %955 = sbr.rel (0) target = $region40
    $region39: #{tpu_custom_call.1} parent=1 // pred_region
      _
    $region40: #{tpu_custom_call.1} parent=1 // pred_fallthru
      _
    %956 = vsyncpa [#allocation3], 1
    %957 = vsyncpa [#allocation5], 1

</llo_original>
